<compile_context>
chip_gen: v7x
topology: tpu7x:2x2x1
jax: 0.10.0
libtpu: 0.0.40
codegen_flags: <defaults>
</compile_context>

<pallas_src>
import jax
import jax.numpy as jnp
from jax.experimental import pallas as pl
from jax.experimental.pallas import tpu as pltpu


def attention_fusion_kernel(x_ref, wfc_ref, bfc_ref, wattn_ref, battn_ref,
                            s_ref, ws_ref):
    # x_ref:     (bt*N, D)  tile of the flattened (B_pad*N, D) input (pipelined)
    # wfc_ref:   (D, A)     fc weight (pre-transposed);  bfc_ref: (1, A)
    # wattn_ref: (1, A)     attn weight row;             battn_ref: (1, 1)
    # s_ref:     (bt, N)    raw attention scores for this step's batches
    # ws_ref:    (bt, A)    locally max-subtracted, unnormalized weighted sums
    N = s_ref.shape[1]
    A = ws_ref.shape[1]
    rows = x_ref.shape[0]
    bt = rows // N                                     # whole batches per step

    # fc(x) on the MXU with f32 accumulation (x / wfc may be bf16).
    h = jnp.dot(x_ref[...], wfc_ref[...],
                preferred_element_type=jnp.float32) + bfc_ref[...]     # (bt*N, A)
    h3 = h.reshape(bt, N, A)

    # Attention scores: VPU multiply + lane (XLU) reduction — keeps the MXU
    # free for the fc matmul instead of a width-1 column matmul.
    # TODO(synk): on v6e/v7x, fold this width-1 projection into an extra fc
    #             output column (MXU is 256 wide) if profiling ever shows the
    #             VPU/XLU score math as the binding slot after the bf16 switch.
    s = jnp.sum(h3 * wattn_ref[...], axis=-1) + battn_ref[...]         # (bt, N)
    s_ref[...] = s

    # Per-batch, locally max-subtracted, unnormalized contribution. Each step
    # holds all N scores of its batches, so the wrapper can rescale exactly.
    m_loc = jnp.max(s, axis=-1, keepdims=True)                         # (bt, 1)
    e = jnp.exp(s - m_loc)                                             # (bt, N)
    ws_ref[...] = jnp.sum(h3 * e[..., None], axis=1)                   # (bt, A)


def _tune_for_chip(target_rows, vmem_limit_bytes):
    """Generation-aware defaults: bigger tiles / scoped VMEM on 128 MiB parts."""
    try:
        vmem_cap = pltpu.get_tpu_info().vmem_capacity_bytes
    except Exception:
        vmem_cap = None
    if vmem_cap is not None and vmem_cap >= 100 * 1024 * 1024:
        # v5e / v6e: 128 MiB physical VMEM per TensorCore.
        default_rows, default_vmem = 8192, 96 * 1024 * 1024
    else:
        # v7x (64 MiB physical) or unknown: conservative but still well past
        # the per-grid-step-overhead sweet spot.
        default_rows, default_vmem = 4096, 44 * 1024 * 1024
    return (target_rows or default_rows, vmem_limit_bytes or default_vmem)


def _pick_batch_tile(B, N, target_rows):
    """Batches per grid step: 8-aligned (full-sublane blocks), bt*N <= target_rows."""
    bt = max(1, target_rows // N)
    bt = max(8, (bt // 8) * 8)
    if bt >= B:
        return B          # single step: blocks equal the full arrays (always legal)
    return bt


def attention_fusion(x, wfc_t, bfc, wattn, battn, *, target_rows=None,
                     compute_dtype=jnp.bfloat16, vmem_limit_bytes=None):
    """x: (B, N, D). wfc_t: (D, A) fc weight transposed, bfc: (1, A),
    wattn: (1, A) attn weight row, battn: (1, 1).
    Returns (weighted_sum (B, A), weights (B, N)) like the PyTorch module."""
    B, N, D = x.shape
    A = wfc_t.shape[1]

    target_rows, vmem_limit_bytes = _tune_for_chip(target_rows, vmem_limit_bytes)
    bt = _pick_batch_tile(B, N, target_rows)
    n_steps = pl.cdiv(B, bt)
    B_pad = n_steps * bt

    x_flat = x.reshape(B * N, D)
    if B_pad != B:
        # Pad ragged last step; padded batches are sliced off before the
        # global-softmax normalization, so they never affect the result.
        pad = jnp.zeros(((B_pad - B) * N, D), x_flat.dtype)
        x_flat = jnp.concatenate([x_flat, pad], axis=0)

    if compute_dtype is not None:
        # bf16 halves HBM traffic on the dominant x stream on every generation;
        # the MXU still accumulates in f32 (preferred_element_type above).
        x_flat = x_flat.astype(compute_dtype)
        wfc_c = wfc_t.astype(compute_dtype)
    else:
        wfc_c = wfc_t

    s_raw, ws_part = pl.pallas_call(
        attention_fusion_kernel,
        grid=(n_steps,),
        in_specs=[
            pl.BlockSpec((bt * N, D), lambda i: (i, 0)),   # x tile (pipelined)
            pl.BlockSpec((D, A), lambda i: (0, 0)),        # fc weight (resident)
            pl.BlockSpec((1, A), lambda i: (0, 0)),        # fc bias
            pl.BlockSpec((1, A), lambda i: (0, 0)),        # attn weight row
            pl.BlockSpec((1, 1), lambda i: (0, 0)),        # attn bias
        ],
        out_specs=(
            pl.BlockSpec((bt, N), lambda i: (i, 0)),       # raw scores (per step)
            pl.BlockSpec((bt, A), lambda i: (i, 0)),       # partial weighted sums
        ),
        out_shape=(jax.ShapeDtypeStruct((B_pad, N), jnp.float32),
                   jax.ShapeDtypeStruct((B_pad, A), jnp.float32)),
        compiler_params=pltpu.CompilerParams(
            # Steps are fully independent now (finalize hoisted out), so the
            # grid axis can be sharded across TensorCores on v7x.
            dimension_semantics=("parallel",),
            vmem_limit_bytes=vmem_limit_bytes,
        ),
    )(x_flat, wfc_c, bfc, wattn, battn)

    # Drop padded batches, then apply the exact global dim=0 softmax normalization
    # (tiny (B,N)/(B,A) work — plain jnp).
    s_raw = s_raw[:B]
    ws_part = ws_part[:B]
    m_row = jnp.max(s_raw, axis=1, keepdims=True)        # (B, 1) == per-step m_loc
    m_glob = jnp.max(m_row)                               # global max over B*N scores
    e = jnp.exp(s_raw - m_glob)                           # (B, N)
    l_glob = jnp.sum(e)                                   # global denominator
    weights = e / l_glob
    weighted_sum = ws_part * (jnp.exp(m_row - m_glob) / l_glob)
    return weighted_sum, weights


def attention_fusion_ref(x, wfc_t, bfc, wattn, battn):
    B, N, D = x.shape
    xf = x.reshape(-1, D)
    h = xf @ wfc_t + bfc
    s = h @ wattn.T + battn                        # (B*N, 1)
    w = jax.nn.softmax(s, axis=0).reshape(B, N)    # softmax over dim=0
    ws = (h.reshape(B, N, -1) * w[..., None]).sum(axis=1)
    return ws, w


if __name__ == "__main__":
    input_dim, attn_dim = 256, 128

    key = jax.random.PRNGKey(0)
    k1, k2, k3, k4, k5, k6 = jax.random.split(key, 6)

    # Deterministic PyTorch-style uniform init; fc weight pre-transposed to (D, A).
    b1 = 1.0 / jnp.sqrt(jnp.float32(input_dim))
    wfc_t = jax.random.uniform(k1, (input_dim, attn_dim), jnp.float32, -b1, b1)
    bfc = jax.random.uniform(k2, (1, attn_dim), jnp.float32, -b1, b1)
    b2 = 1.0 / jnp.sqrt(jnp.float32(attn_dim))
    wattn = jax.random.uniform(k3, (1, attn_dim), jnp.float32, -b2, b2)
    battn = jax.random.uniform(k4, (1, 1), jnp.float32, -b2, b2)

    # --- Small shape, exact f32 path (tight tolerance) --------------------
    B, N = 2, 8
    x = jax.random.normal(k5, (B, N, input_dim), dtype=jnp.float32)
    ws, w = attention_fusion(x, wfc_t, bfc, wattn, battn,
                             compute_dtype=jnp.float32)
    jax.block_until_ready((ws, w))
    ws_ref, w_ref = attention_fusion_ref(x, wfc_t, bfc, wattn, battn)
    assert ws.shape == (B, attn_dim) and w.shape == (B, N)
    assert jnp.allclose(ws, ws_ref, rtol=1e-5, atol=1e-5)
    assert jnp.allclose(w, w_ref, rtol=1e-5, atol=1e-5)

    # --- Default bf16 x / fc-weight streaming path (looser tolerance) -----
    ws16, w16 = attention_fusion(x, wfc_t, bfc, wattn, battn)
    jax.block_until_ready((ws16, w16))
    assert jnp.allclose(ws16, ws_ref, rtol=5e-2, atol=5e-2)
    assert jnp.allclose(w16, w_ref, rtol=5e-2, atol=1e-2)

    # --- Ragged B exercising the multi-step, padded, "parallel" grid ------
    B2 = 20
    x2 = jax.random.normal(k6, (B2, N, input_dim), dtype=jnp.float32)
    ws2, w2 = attention_fusion(x2, wfc_t, bfc, wattn, battn,
                               compute_dtype=jnp.float32, target_rows=64)
    jax.block_until_ready((ws2, w2))
    ws2_ref, w2_ref = attention_fusion_ref(x2, wfc_t, bfc, wattn, battn)
    assert ws2.shape == (B2, attn_dim) and w2.shape == (B2, N)
    assert jnp.allclose(ws2, ws2_ref, rtol=1e-5, atol=1e-5)
    assert jnp.allclose(w2, w2_ref, rtol=1e-5, atol=1e-5)

    print("KERNEL_OK")
</pallas_src>

<mosaic_0001>
module attributes {stable_mosaic.version = 11 : i64} {
  func.func @attention_fusion_kernel(%arg0: i32, %arg1: memref<16x256xf32, #tpu.memory_space<vmem>>, %arg2: memref<256x128xf32, #tpu.memory_space<vmem>>, %arg3: memref<1x128xf32, #tpu.memory_space<vmem>>, %arg4: memref<1x128xf32, #tpu.memory_space<vmem>>, %arg5: memref<1x1xf32, #tpu.memory_space<vmem>>, %arg6: memref<2x8xf32, #tpu.memory_space<vmem>>, %arg7: memref<2x128xf32, #tpu.memory_space<vmem>>) attributes {dimension_semantics = [#tpu.dimension_semantics<parallel>], iteration_bounds = array<i64: 1>, scalar_prefetch = 0 : i64, scratch_operands = 0 : i64, tpu.core_type = #tpu.core_type<tc>, window_params = [{transform_indices = @transform_0, window_bounds = array<i64: 16, 256>}, {pipeline_mode = #tpu.pipeline_mode<synchronous>, transform_indices = @transform_1, window_bounds = array<i64: 256, 128>}, {pipeline_mode = #tpu.pipeline_mode<synchronous>, transform_indices = @transform_2, window_bounds = array<i64: 1, 128>}, {pipeline_mode = #tpu.pipeline_mode<synchronous>, transform_indices = @transform_3, window_bounds = array<i64: 1, 128>}, {pipeline_mode = #tpu.pipeline_mode<synchronous>, transform_indices = @transform_4, window_bounds = array<i64: 1, 1>}, {transform_indices = @transform_5, window_bounds = array<i64: 2, 8>}, {transform_indices = @transform_6, window_bounds = array<i64: 2, 128>}]} {
    %c0 = arith.constant 0 : index
    %c0_0 = arith.constant 0 : index
    %0 = vector.load %arg1[%c0, %c0_0] : memref<16x256xf32, #tpu.memory_space<vmem>>, vector<16x256xf32>
    %c0_1 = arith.constant 0 : index
    %c0_2 = arith.constant 0 : index
    %1 = vector.load %arg2[%c0_1, %c0_2] : memref<256x128xf32, #tpu.memory_space<vmem>>, vector<256x128xf32>
    %cst = arith.constant dense<0.000000e+00> : vector<16x128xf32>
    %2 = tpu.matmul %0, %1, %cst {dimension_numbers = #tpu.dot_dimension_numbers<[1], [0], [0], [1], [0, 0, 1, 1], [], []>} : vector<16x256xf32>, vector<256x128xf32>, vector<16x128xf32> -> vector<16x128xf32>
    %c0_3 = arith.constant 0 : index
    %c0_4 = arith.constant 0 : index
    %3 = vector.load %arg3[%c0_3, %c0_4] : memref<1x128xf32, #tpu.memory_space<vmem>>, vector<1x128xf32>
    %4 = vector.broadcast %3 : vector<1x128xf32> to vector<16x128xf32>
    %5 = arith.addf %2, %4 : vector<16x128xf32>
    %6 = vector.shape_cast %5 : vector<16x128xf32> to vector<2x8x128xf32>
    %c0_5 = arith.constant 0 : index
    %c0_6 = arith.constant 0 : index
    %7 = vector.load %arg4[%c0_5, %c0_6] : memref<1x128xf32, #tpu.memory_space<vmem>>, vector<1x128xf32>
    %8 = vector.shape_cast %7 : vector<1x128xf32> to vector<1x1x128xf32>
    %9 = vector.broadcast %8 : vector<1x1x128xf32> to vector<2x8x128xf32>
    %10 = arith.mulf %6, %9 : vector<2x8x128xf32>
    %cst_7 = arith.constant dense<0.000000e+00> : vector<2x8xf32>
    %11 = vector.multi_reduction <add>, %10, %cst_7 [2] : vector<2x8x128xf32> to vector<2x8xf32>
    %c0_8 = arith.constant 0 : index
    %c0_9 = arith.constant 0 : index
    %12 = vector.load %arg5[%c0_8, %c0_9] : memref<1x1xf32, #tpu.memory_space<vmem>>, vector<1x1xf32>
    %13 = vector.broadcast %12 : vector<1x1xf32> to vector<2x8xf32>
    %14 = arith.addf %11, %13 : vector<2x8xf32>
    %c0_10 = arith.constant 0 : index
    %c0_11 = arith.constant 0 : index
    %15 = vector.load %arg6[%c0_10, %c0_11] : memref<2x8xf32, #tpu.memory_space<vmem>>, vector<2x8xf32>
    tpu.vector_store %arg6[%c0_10, %c0_11], %14 {strides = array<i32>} : memref<2x8xf32, #tpu.memory_space<vmem>>, vector<2x8xf32>,
    %cst_12 = arith.constant dense<0xFF800000> : vector<2xf32>
    %16 = vector.multi_reduction <maximumf>, %14, %cst_12 [1] : vector<2x8xf32> to vector<2xf32>
    %17 = vector.shape_cast %16 : vector<2xf32> to vector<2x1xf32>
    %18 = vector.broadcast %17 : vector<2x1xf32> to vector<2x8xf32>
    %19 = arith.subf %14, %18 : vector<2x8xf32>
    %20 = math.exp %19 : vector<2x8xf32>
    %21 = vector.shape_cast %20 : vector<2x8xf32> to vector<2x8x1xf32>
    %22 = vector.broadcast %21 : vector<2x8x1xf32> to vector<2x8x128xf32>
    %23 = arith.mulf %6, %22 : vector<2x8x128xf32>
    %cst_13 = arith.constant dense<0.000000e+00> : vector<2x128xf32>
    %24 = vector.multi_reduction <add>, %23, %cst_13 [1] : vector<2x8x128xf32> to vector<2x128xf32>
    %c0_14 = arith.constant 0 : index
    %c0_15 = arith.constant 0 : index
    %25 = vector.load %arg7[%c0_14, %c0_15] : memref<2x128xf32, #tpu.memory_space<vmem>>, vector<2x128xf32>
    tpu.vector_store %arg7[%c0_14, %c0_15], %24 {strides = array<i32>} : memref<2x128xf32, #tpu.memory_space<vmem>>, vector<2x128xf32>,
    return
  }
  func.func @transform_0(%arg0: i32) -> (i32, i32) {
    %c0_i32 = arith.constant 0 : i32
    %c0_i32_0 = arith.constant 0 : i32
    return %arg0, %c0_i32 : i32, i32
  }
  func.func @transform_1(%arg0: i32) -> (i32, i32) {
    %c0_i32 = arith.constant 0 : i32
    %c0_i32_0 = arith.constant 0 : i32
    %c0_i32_1 = arith.constant 0 : i32
    return %c0_i32, %c0_i32_0 : i32, i32
  }
  func.func @transform_2(%arg0: i32) -> (i32, i32) {
    %c0_i32 = arith.constant 0 : i32
    %c0_i32_0 = arith.constant 0 : i32
    %c0_i32_1 = arith.constant 0 : i32
    return %c0_i32, %c0_i32_0 : i32, i32
  }
  func.func @transform_3(%arg0: i32) -> (i32, i32) {
    %c0_i32 = arith.constant 0 : i32
    %c0_i32_0 = arith.constant 0 : i32
    %c0_i32_1 = arith.constant 0 : i32
    return %c0_i32, %c0_i32_0 : i32, i32
  }
  func.func @transform_4(%arg0: i32) -> (i32, i32) {
    %c0_i32 = arith.constant 0 : i32
    %c0_i32_0 = arith.constant 0 : i32
    %c0_i32_1 = arith.constant 0 : i32
    return %c0_i32, %c0_i32_0 : i32, i32
  }
  func.func @transform_5(%arg0: i32) -> (i32, i32) {
    %c0_i32 = arith.constant 0 : i32
    %c0_i32_0 = arith.constant 0 : i32
    return %arg0, %c0_i32 : i32, i32
  }
  func.func @transform_6(%arg0: i32) -> (i32, i32) {
    %c0_i32 = arith.constant 0 : i32
    %c0_i32_0 = arith.constant 0 : i32
    return %arg0, %c0_i32 : i32, i32
  }
}

</mosaic_0001>

<llo_original>
// kernel: tpu_custom_call.1
$region0: #{tpu_custom_call.1}
  #allocation0 [shape = 'u32[]', space=smem, size = 0x4, offset = 0x4, fixed_abs, tag = 'smem constant byte address 0x4 - core index']
  #allocation1 [shape = 'u32[144,128]{1,0:T(1,128)}', space=vmem, size = 0x12000, scoped, tag = 'internal scratch']
  #allocation2 [shape = 'f32[1,1]{1,0:T(1,128)S(1)}', space=vmem, size = 0x200, scoped, tag = 'scoped memory for tpu_custom_call.1']
  %s0 = inlined_call_operand.hbm [shape: f32[16,256], index: 0, kind: input, shape index: {}]
  %s1 = inlined_call_operand.hbm [shape: f32[256,128], index: 1, kind: input, shape index: {}]
  %s2 = inlined_call_operand.vmem [shape: f32[1,128], index: 2, kind: input, shape index: {}]
  %s3 = inlined_call_operand.vmem [shape: f32[1,128], index: 3, kind: input, shape index: {}]
  %s4 = inlined_call_operand.<no memory space> [shape: f32[1,1], index: 4, kind: input, shape index: {}]
  %s5 = inlined_call_operand.hbm [shape: f32[2,8], index: 5, kind: output, shape index: {0}]
  %s6 = inlined_call_operand.hbm [shape: f32[2,128], index: 6, kind: output, shape index: {1}]
  %7 = xla_tuple %s5, %s6
  %s8 = sld [smem:[#allocation0]]
  $region46: #{tpu_custom_call.1} parent=0
    _
  %s10 = ssub.s32 1, %s8
  %s11 = scalar_select 0, %s10, %s8
  %v12 = vstv %s4
  %13 = vst [vmem:[#allocation2] sm:$0x1] %v12
  $region1: #{tpu_custom_call.1} parent=0
    #allocation3 [shape = 'u8[16384]{0}', space=vmem, size = 0x4000, scoped, tag = 'input window, operand 0, single buffered']
    #allocation4 [shape = 's32[1]{0}', space=sflag, size = 0x4, scoped, tag = 'scoped memory for tpu_custom_call.1']
    #allocation5 [shape = 's32[1]{0}', space=sflag, size = 0x4, scoped, tag = 'scoped memory for tpu_custom_call.1']
    #allocation6 [shape = 'u8[131072]{0}', space=vmem, size = 0x20000, scoped, tag = 'input window, operand 1, single buffered']
    #allocation7 [shape = 's32[1]{0}', space=sflag, size = 0x4, scoped, tag = 'scoped memory for tpu_custom_call.1']
    #allocation8 [shape = 'u8[1024]{0}', space=vmem, size = 0x400, scoped, tag = 'output window, operand 0, single buffered']
    #allocation9 [shape = 'u8[1024]{0}', space=vmem, size = 0x400, scoped, tag = 'output window, operand 1, single buffered']
    #allocation10 [shape = 's32[1]{0}', space=sflag, size = 0x4, scoped, tag = 'scoped memory for tpu_custom_call.1']
    %14 = vsyncpa [#allocation4], 0
    %15 = vsyncpa [#allocation7], 0
    %16 = vsyncpa [#allocation5], 0
    %17 = vsyncpa [#allocation10], 0
    // Predicated region
    $region2: #{tpu_custom_call.1} parent=1 // pred_check
      _
    $region3: #{tpu_custom_call.1} parent=1 // pred_check_branch
      %19 = sbr.rel (0) target = $region5
    $region4: #{tpu_custom_call.1} parent=1 // pred_region
      %s21 = ssub.s32 512, 512
      %22 = vsyncadd [#allocation4], %s21
      %s23 = sshll.u32 [#allocation3], 4
      %s24 = int_to_ptr.vmem [resolvable:$true] %s23
      %29 = dma.hbm_to_vmem [thread:$0]  %s0, 512, %s24, [#allocation4], 256, 256, 16
    $region5: #{tpu_custom_call.1} parent=1 // pred_fallthru
      _
    // Predicated region
    $region6: #{tpu_custom_call.1} parent=1 // pred_check
      _
    $region7: #{tpu_custom_call.1} parent=1 // pred_check_branch
      %31 = sbr.rel (0) target = $region9
    $region8: #{tpu_custom_call.1} parent=1 // pred_region
      %s33 = ssub.s32 4096, 4096
      %34 = vsyncadd [#allocation7], %s33
      %s35 = sshll.u32 [#allocation6], 4
      %s36 = int_to_ptr.vmem [resolvable:$true] %s35
      %41 = dma.hbm_to_vmem [thread:$0]  %s1, 4096, %s36, [#allocation7], 128, 128, 8
    $region9: #{tpu_custom_call.1} parent=1 // pred_fallthru
      _
    // Predicated region
    $region10: #{tpu_custom_call.1} parent=1 // pred_check
      _
    $region11: #{tpu_custom_call.1} parent=1 // pred_check_branch
      %43 = sbr.rel (0) target = $region13
    $region12: #{tpu_custom_call.1} parent=1 // pred_region
      _
    $region13: #{tpu_custom_call.1} parent=1 // pred_fallthru
      _
    // Predicated region
    $region14: #{tpu_custom_call.1} parent=1 // pred_check
      _
    $region15: #{tpu_custom_call.1} parent=1 // pred_check_branch
      %45 = sbr.rel (0) target = $region17
    $region16: #{tpu_custom_call.1} parent=1 // pred_region
      _
    $region17: #{tpu_custom_call.1} parent=1 // pred_fallthru
      _
    // Predicated region
    $region18: #{tpu_custom_call.1} parent=1 // pred_check
      _
    $region19: #{tpu_custom_call.1} parent=1 // pred_check_branch
      %47 = sbr.rel (0) target = $region21
    $region20: #{tpu_custom_call.1} parent=1 // pred_region
      _
    $region21: #{tpu_custom_call.1} parent=1 // pred_fallthru
      _
    // Predicated region
    $region22: #{tpu_custom_call.1} parent=1 // pred_check
      _
    $region23: #{tpu_custom_call.1} parent=1 // pred_check_branch
      %49 = sbr.rel (0) target = $region25
    $region24: #{tpu_custom_call.1} parent=1 // pred_region
      %50 = dma.done [#allocation4], 512
    $region25: #{tpu_custom_call.1} parent=1 // pred_fallthru
      _
    // Predicated region
    $region26: #{tpu_custom_call.1} parent=1 // pred_check
      _
    $region27: #{tpu_custom_call.1} parent=1 // pred_check_branch
      %52 = sbr.rel (0) target = $region29
    $region28: #{tpu_custom_call.1} parent=1 // pred_region
      %53 = dma.done [#allocation7], 4096
    $region29: #{tpu_custom_call.1} parent=1 // pred_fallthru
      _
    %v54 = vld [vmem:[#allocation3] sm:$0xff]
    %v55 = vld [vmem:[#allocation3 + $0x8] sm:$0xff]
    %v56 = vld [vmem:[#allocation3 + $0x10] sm:$0xff]
    %v57 = vld [vmem:[#allocation3 + $0x18] sm:$0xff]
    %v58 = vld [vmem:[#allocation6] sm:$0xff]
    %v59 = vld [vmem:[#allocation6 + $0x8] sm:$0xff]
    %v60 = vld [vmem:[#allocation6 + $0x10] sm:$0xff]
    %v61 = vld [vmem:[#allocation6 + $0x18] sm:$0xff]
    %v62 = vld [vmem:[#allocation6 + $0x20] sm:$0xff]
    %v63 = vld [vmem:[#allocation6 + $0x28] sm:$0xff]
    %v64 = vld [vmem:[#allocation6 + $0x30] sm:$0xff]
    %v65 = vld [vmem:[#allocation6 + $0x38] sm:$0xff]
    %v66 = vld [vmem:[#allocation6 + $0x40] sm:$0xff]
    %v67 = vld [vmem:[#allocation6 + $0x48] sm:$0xff]
    %v68 = vld [vmem:[#allocation6 + $0x50] sm:$0xff]
    %v69 = vld [vmem:[#allocation6 + $0x58] sm:$0xff]
    %v70 = vld [vmem:[#allocation6 + $0x60] sm:$0xff]
    %v71 = vld [vmem:[#allocation6 + $0x68] sm:$0xff]
    %v72 = vld [vmem:[#allocation6 + $0x70] sm:$0xff]
    %v73 = vld [vmem:[#allocation6 + $0x78] sm:$0xff]
    %v74 = vld [vmem:[#allocation6 + $0x80] sm:$0xff]
    %v75 = vld [vmem:[#allocation6 + $0x88] sm:$0xff]
    %v76 = vld [vmem:[#allocation6 + $0x90] sm:$0xff]
    %v77 = vld [vmem:[#allocation6 + $0x98] sm:$0xff]
    %v78 = vld [vmem:[#allocation6 + $0xa0] sm:$0xff]
    %v79 = vld [vmem:[#allocation6 + $0xa8] sm:$0xff]
    %v80 = vld [vmem:[#allocation6 + $0xb0] sm:$0xff]
    %v81 = vld [vmem:[#allocation6 + $0xb8] sm:$0xff]
    %v82 = vld [vmem:[#allocation6 + $0xc0] sm:$0xff]
    %v83 = vld [vmem:[#allocation6 + $0xc8] sm:$0xff]
    %v84 = vld [vmem:[#allocation6 + $0xd0] sm:$0xff]
    %v85 = vld [vmem:[#allocation6 + $0xd8] sm:$0xff]
    %v86 = vld [vmem:[#allocation6 + $0xe0] sm:$0xff]
    %v87 = vld [vmem:[#allocation6 + $0xe8] sm:$0xff]
    %v88 = vld [vmem:[#allocation6 + $0xf0] sm:$0xff]
    %v89 = vld [vmem:[#allocation6 + $0xf8] sm:$0xff]
    %v90 = vld [vmem:[%s2] sm:$0x1]
    %v92 = vlaneseq
    %v93 = vshrl.u32 %v92, 7
    %v94 = vsub.s32 0, %v93
    %v95 = vrot.slane %v90, %v94
    %97 = vmatprep.subr.mxu0 0.0
    %98 = vmatpush1.msra.mxu0 %v58
    %99 = vmatprep.subr.mxu0 0.0
    %100 = vmatpush1.msra.mxu0 %v59
    %101 = vmatprep.subr.mxu0 0.0
    %102 = vmatpush1.msra.mxu0 %v60
    %103 = vmatprep.subr.mxu0 0.0
    %104 = vmatpush1.msra.mxu0 %v61
    %105 = vmatprep.subr.mxu0 0.0
    %106 = vmatpush1.msra.mxu0 %v62
    %107 = vmatprep.subr.mxu0 0.0
    %108 = vmatpush1.msra.mxu0 %v63
    %109 = vmatprep.subr.mxu0 0.0
    %110 = vmatpush1.msra.mxu0 %v64
    %111 = vmatprep.subr.mxu0 0.0
    %112 = vmatpush1.msra.mxu0 %v65
    %113 = vmatprep.subr.mxu0 0.0
    %114 = vmatpush1.msra.mxu0 %v66
    %115 = vmatprep.subr.mxu0 0.0
    %116 = vmatpush1.msra.mxu0 %v67
    %117 = vmatprep.subr.mxu0 0.0
    %118 = vmatpush1.msra.mxu0 %v68
    %119 = vmatprep.subr.mxu0 0.0
    %120 = vmatpush1.msra.mxu0 %v69
    %121 = vmatprep.subr.mxu0 0.0
    %122 = vmatpush1.msra.mxu0 %v70
    %123 = vmatprep.subr.mxu0 0.0
    %124 = vmatpush1.msra.mxu0 %v71
    %125 = vmatprep.subr.mxu0 0.0
    %126 = vmatpush1.msra.mxu0 %v72
    %127 = vmatprep.subr.mxu0 0.0
    %128 = vmatpush1.msra.mxu0 %v73
    %129 = vmatprep.subr.mxu0 0.0
    %130 = vmatpush1.msra.mxu0 %v74
    %131 = vmatprep.subr.mxu0 0.0
    %132 = vmatpush1.msra.mxu0 %v75
    %133 = vmatprep.subr.mxu0 0.0
    %134 = vmatpush1.msra.mxu0 %v76
    %135 = vmatprep.subr.mxu0 0.0
    %136 = vmatpush1.msra.mxu0 %v77
    %137 = vmatprep.subr.mxu0 0.0
    %138 = vmatpush1.msra.mxu0 %v78
    %139 = vmatprep.subr.mxu0 0.0
    %140 = vmatpush1.msra.mxu0 %v79
    %141 = vmatprep.subr.mxu0 0.0
    %142 = vmatpush1.msra.mxu0 %v80
    %143 = vmatprep.subr.mxu0 0.0
    %144 = vmatpush1.msra.mxu0 %v81
    %145 = vmatprep.subr.mxu0 0.0
    %146 = vmatpush1.msra.mxu0 %v82
    %147 = vmatprep.subr.mxu0 0.0
    %148 = vmatpush1.msra.mxu0 %v83
    %149 = vmatprep.subr.mxu0 0.0
    %150 = vmatpush1.msra.mxu0 %v84
    %151 = vmatprep.subr.mxu0 0.0
    %152 = vmatpush1.msra.mxu0 %v85
    %153 = vmatprep.subr.mxu0 0.0
    %154 = vmatpush1.msra.mxu0 %v86
    %155 = vmatprep.subr.mxu0 0.0
    %156 = vmatpush1.msra.mxu0 %v87
    %157 = vmatprep.subr.mxu0 0.0
    %158 = vmatpush1.msra.mxu0 %v88
    %159 = vmatprep.subr.mxu0 0.0
    %160 = vmatpush1.msra.mxu0 %v89
    %161 = vmatprep.mubr.f32.mxu0 %v55
    %162 = vmatmul.mubr.f32.gmra.mrb[0].mxu0 %v54
    %v163 = vpop.f32.mrb[0].mxu0
    %v164 = vadd.f32 %v95, %v163
    %v165 = vpop.f32.mrb[0].mxu0
    %166 = vmatprep.mubr.f32.mxu0 %v57
    %167 = vmatmul.mubr.f32.gmra.mrb[0].mxu0 %v56
    %v168 = vpop.f32.mrb[0].mxu0
    %v169 = vadd.f32 %v95, %v168
    %v170 = vpop.f32.mrb[0].mxu0
    %171 = vdwg.mxu0
    %v172 = vld [vmem:[%s3] sm:$0x1]
    %v174 = vlaneseq
    %v175 = vshrl.u32 %v174, 7
    %v176 = vsub.s32 0, %v175
    %v177 = vrot.slane %v172, %v176
    %v179 = vmul.f32 %v164, %v177
    %v180 = vmul.f32 %v169, %v177
    %181 = vadd.xlane.f32.xlu0 %v179
    %v182 = vpop.xlane.xlu0 %181
    %183 = vadd.xlane.f32.xlu0 %v180
    %v184 = vpop.xlane.xlu0 %183
    %v185 = vld [vmem:[#allocation2] sm:$0x1]
    %v187 = vlaneseq
    %v188 = vshrl.u32 %v187, 7
    %v189 = vsub.s32 0, %v188
    %v190 = vrot.slane %v185, %v189
    %191 = vset.pattern.permute.xlu0 0
    %192 = vperm.xlu0 %191, %v190
    %v193 = vpop.permute.xlu0 %192
    %v195 = vadd.f32 %v182, %v193
    %v196 = vadd.f32 %v184, %v193
    %v199 = vlaneseq
    %v200 = vand.u32 %v199, 127
    %v201 = vlaneseq
    %v202 = vshrl.u32 %v201, 7
    %v203 = vsub.s32 %v200, %v202
    %v204 = vrot.slane %v195, %v203
    %v205 = vlaneseq
    %v206 = vshrl.u32 %v205, 7
    %v207 = vsub.s32 %v200, %v206
    %v208 = vrot.slane %v196, %v207
    %vm209 = vcmask 1041409
    %v210 = vsel %vm209, %v208, %v204
    %vm212 = vcmask 58368
    %213 = vst.msk [vmem:[#allocation8] sm:$0x3] %vm212, %v210
    %v214 = vsel %vm212, %v210, -inf
    %215 = vmax.xlane.f32.xlu0 %v214
    %v216 = vpop.xlane.xlu0 %215
    %v218 = vlaneseq
    %v219 = vshrl.u32 %v218, 7
    %v220 = vsub.s32 0, %v219
    %v221 = vrot.slane %v216, %v220
    %v222 = vlaneseq
    %v223 = vshrl.u32 %v222, 7
    %v224 = vsub.s32 1, %v223
    %v225 = vrot.slane %v216, %v224
    %v228 = vsub.f32 %v195, %v221
    %v229 = vsub.f32 %v196, %v225
    %v230 = vmul.f32 %v228, 1.442695
    %v231 = vpow.pop %v230
    %v232 = vmul.f32 %v229, 1.442695
    %v233 = vpow.pop %v232
    %235 = vset.pattern.permute.xlu0 0
    %236 = vperm.xlu0 %235, %v231
    %v237 = vpop.permute.xlu0 %236
    %240 = vset.pattern.permute.xlu0 0
    %241 = vperm.xlu0 %240, %v233
    %v242 = vpop.permute.xlu0 %241
    %v244 = vmul.f32 %v164, %v237
    %v245 = vmul.f32 %v169, %v242
    %v246 = vrot.slane %v244, 4
    %v247 = vadd.f32 %v244, %v246
    %v248 = vrot.slane %v247, 2
    %v249 = vadd.f32 %v247, %v248
    %v250 = vrot.slane %v249, 1
    %v251 = vadd.f32 %v249, %v250
    %v252 = vrot.slane %v245, 4
    %v253 = vadd.f32 %v245, %v252
    %v254 = vrot.slane %v253, 2
    %v255 = vadd.f32 %v253, %v254
    %v256 = vrot.slane %v255, 1
    %v257 = vadd.f32 %v255, %v256
    %v260 = vsel %vm209, %v257, %v251
    %262 = vst [vmem:[#allocation9] sm:$0x3] %v260
    // Predicated region
    $region30: #{tpu_custom_call.1} parent=1 // pred_check
      _
    $region31: #{tpu_custom_call.1} parent=1 // pred_check_branch
      %264 = sbr.rel (0) target = $region33
    $region32: #{tpu_custom_call.1} parent=1 // pred_region
      %s266 = ssub.s32 32, 32
      %267 = vsyncadd [#allocation5], %s266
      %s269 = sshll.u32 [#allocation8], 4
      %s270 = int_to_ptr.vmem [resolvable:$true] %s269
      %272 = dma.vmem_to_hbm [thread:$0]  %s270, 32, %s5, [#allocation5]
    $region33: #{tpu_custom_call.1} parent=1 // pred_fallthru
      _
    // Predicated region
    $region34: #{tpu_custom_call.1} parent=1 // pred_check
      _
    $region35: #{tpu_custom_call.1} parent=1 // pred_check_branch
      %274 = sbr.rel (0) target = $region37
    $region36: #{tpu_custom_call.1} parent=1 // pred_region
      %s276 = ssub.s32 32, 32
      %277 = vsyncadd [#allocation10], %s276
      %s279 = sshll.u32 [#allocation9], 4
      %s280 = int_to_ptr.vmem [resolvable:$true] %s279
      %282 = dma.vmem_to_hbm [thread:$0]  %s280, 32, %s6, [#allocation10]
    $region37: #{tpu_custom_call.1} parent=1 // pred_fallthru
      _
    // Predicated region
    $region38: #{tpu_custom_call.1} parent=1 // pred_check
      _
    $region39: #{tpu_custom_call.1} parent=1 // pred_check_branch
      %284 = sbr.rel (0) target = $region41
    $region40: #{tpu_custom_call.1} parent=1 // pred_region
      %285 = dma.done [#allocation5], 32
    $region41: #{tpu_custom_call.1} parent=1 // pred_fallthru
      _
    // Predicated region
    $region42: #{tpu_custom_call.1} parent=1 // pred_check
      _
    $region43: #{tpu_custom_call.1} parent=1 // pred_check_branch
      %287 = sbr.rel (0) target = $region45
    $region44: #{tpu_custom_call.1} parent=1 // pred_region
      %288 = dma.done [#allocation10], 32
    $region45: #{tpu_custom_call.1} parent=1 // pred_fallthru
      _
    %289 = vsyncpa [#allocation4], 1
    %290 = vsyncpa [#allocation7], 1
    %291 = vsyncpa [#allocation5], 1
    %292 = vsyncpa [#allocation10], 1

</llo_original>
